<compile_context>
chip_gen: v5e
topology: v5e:2x2
jax: 0.10.0
libtpu: 0.0.40
codegen_flags: <defaults>
</compile_context>

<pallas_src>
import functools
import math

import jax
import jax.numpy as jnp
from jax.experimental import pallas as pl
from jax.experimental.pallas import tpu as pltpu


def gate_kernel(img_ref, txt_ref, wi_ref, wt_ref, out_ref, *, precision, n_tiled):
    img = img_ref[...]                                   # (tb, D), native dtype
    txt = txt_ref[...]                                   # (tb, D), native dtype
    # "concat" never materializes: two K=D MXU contractions, f32 accumulation.
    logits = jnp.dot(img, wi_ref[...],
                     preferred_element_type=jnp.float32, precision=precision)
    logits = logits + jnp.dot(txt, wt_ref[...],
                              preferred_element_type=jnp.float32,
                              precision=precision)
    # sigmoid(x) == 0.5 * tanh(0.5 * x) + 0.5  -> tanh runs on the EUP slot.
    z = 0.5 * jnp.tanh(0.5 * logits) + 0.5               # (tb, tn), f32

    if n_tiled:
        # Output/N axis is tiled: blend only the matching activation columns.
        tn = out_ref.shape[1]
        start = pl.multiple_of(pl.program_id(0) * tn, 128)
        img_b = img_ref[:, pl.ds(start, tn)]
        txt_b = txt_ref[:, pl.ds(start, tn)]
    else:
        img_b, txt_b = img, txt

    # z*img + (1-z)*txt  ==  txt + z*(img - txt)   (one fewer VPU mul).
    if img_b.dtype == jnp.bfloat16:
        # TODO(synk): on v5e (no bf16 VALU/EUP) prefer the f32 epilogue below.
        zb = z.astype(jnp.bfloat16)
        out = txt_b + zb * (img_b - txt_b)
    else:
        img_f = img_b.astype(jnp.float32)
        txt_f = txt_b.astype(jnp.float32)
        out = txt_f + z * (img_f - txt_f)
    out_ref[...] = out.astype(out_ref.dtype)


def prepare_gate_weight(weight, act_dtype):
    """One-time (init-time) repack of the PyTorch Linear weight (D, 2D).

    Returns the two (D, D) halves of W.T cast to the activation dtype so the
    MXU runs in the native dtype (no silent f32 promotion of a bf16 LHS) and
    the forward never pays the transpose / cast.
    """
    w_t = jnp.asarray(weight).T                 # (2D, D)
    d = w_t.shape[1]
    return w_t[:d].astype(act_dtype), w_t[d:].astype(act_dtype)


def _choose_tb(B, dtype, cap=512):
    """Batch tile: sublane-pack multiple, large (<=cap), >=2 grid steps."""
    pack = max(8, 32 // jnp.dtype(dtype).itemsize)   # 8 f32, 16 bf16, 32 int8
    max_tb = min(cap, B)
    if B >= 2 * pack:
        max_tb = min(max_tb, B // 2)                 # guarantee >= 2 grid steps
    best = None
    t = pack
    while t <= max_tb:
        if B % t == 0:
            best = t
        t += pack
    return best if best is not None else B           # full-batch fallback


def _choose_tn(D, w_itemsize, target_bytes=8 << 20):
    """Largest multiple of 128 dividing D whose (2D, tn) slab fits target."""
    best = 128
    t = 128
    while t <= D:
        if D % t == 0 and 2 * D * t * w_itemsize <= target_bytes:
            best = t
        t += 128
    return best


def _vmem_limit_bytes(resident, streamed):
    total = resident + streamed
    limit = int(total * 1.5) + (4 << 20)              # headroom / compiler scratch
    return max(32 << 20, min(limit, 128 << 20))


def gate_forward(image_emb, text_emb, w_img, w_txt, *, block_b=None,
                 block_n=None, precision=None):
    """image_emb, text_emb: [B, D]; w_img, w_txt: [D, D] halves of W.T."""
    B, D = image_emb.shape
    assert text_emb.shape == (B, D)
    assert w_img.shape == (D, D) and w_txt.shape == (D, D)

    act_itemsize = jnp.dtype(image_emb.dtype).itemsize
    w_itemsize = jnp.dtype(w_img.dtype).itemsize

    resident_w_bytes = 2 * D * D * w_itemsize
    n_tiled = (block_n is not None) or (resident_w_bytes > (24 << 20)
                                        and D % 128 == 0)
    # TODO(synk): a >24 MiB weight with D not a multiple of 128 falls back to
    # the fully-resident path and may exceed v7x's 64 MiB VMEM (needs padded
    # N-tiling).

    tb = _choose_tb(B, image_emb.dtype) if block_b is None else block_b
    assert B % tb == 0, "batch tile must divide B"
    grid_b = pl.cdiv(B, tb)

    kernel = functools.partial(gate_kernel, precision=precision, n_tiled=n_tiled)

    cost = pl.CostEstimate(
        flops=2 * B * (2 * D) * D,
        transcendentals=B * D,
        bytes_accessed=3 * B * D * act_itemsize + 2 * D * D * w_itemsize,
    )

    if not n_tiled:
        grid = (grid_b,)
        act_spec = pl.BlockSpec((tb, D), lambda i: (i, 0))
        # Constant block index + Buffered(1): weight DMA'd once, stays resident
        # single-buffered (no wasted second copy in VMEM).
        w_spec = pl.BlockSpec((D, D), lambda i: (0, 0),
                              pipeline_mode=pl.Buffered(1))
        out_spec = act_spec
        semantics = ("parallel",)
        vmem = _vmem_limit_bytes(
            resident=2 * D * D * w_itemsize,
            streamed=2 * (3 * tb * D) * act_itemsize)      # dbl-buffered img/txt/out
    else:
        tn = _choose_tn(D, w_itemsize) if block_n is None else block_n
        assert D % tn == 0 and tn % 128 == 0, "bad output tile"
        grid_n = D // tn
        # N axis slowest -> each (D, tn) weight slab is DMA'd only grid_n times.
        grid = (grid_n, grid_b)
        act_spec = pl.BlockSpec((tb, D), lambda n, b: (b, 0))
        w_spec = pl.BlockSpec((D, tn), lambda n, b: (0, n))
        out_spec = pl.BlockSpec((tb, tn), lambda n, b: (b, n))
        semantics = ("parallel", "parallel")
        vmem = _vmem_limit_bytes(
            resident=0,
            streamed=2 * (2 * D * tn * w_itemsize
                          + 2 * tb * D * act_itemsize
                          + tb * tn * act_itemsize))

    return pl.pallas_call(
        kernel,
        out_shape=jax.ShapeDtypeStruct((B, D), image_emb.dtype),
        grid=grid,
        in_specs=[act_spec, act_spec, w_spec, w_spec],
        out_specs=out_spec,
        compiler_params=pltpu.CompilerParams(
            dimension_semantics=semantics,
            vmem_limit_bytes=vmem,
        ),
        cost_estimate=cost,
    )(image_emb, text_emb, w_img, w_txt)


def gate_reference(image_emb, text_emb, weight, precision=None):
    whole = jnp.concatenate([image_emb, text_emb], axis=1)
    z = jax.nn.sigmoid(jnp.dot(whole, weight.T, precision=precision))
    return z * image_emb + (1.0 - z) * text_emb


if __name__ == "__main__":
    key = jax.random.PRNGKey(0)
    k_img, k_txt, k_w, k_img2, k_txt2, k_w2 = jax.random.split(key, 6)
    hi = jax.lax.Precision.HIGHEST   # f32 test: match numerics deliberately

    # ---- Test 1: weight-resident path (small D) -----------------------------
    B, D = 64, 128
    image_emb = jax.random.normal(k_img, (B, D), dtype=jnp.float32)
    text_emb = jax.random.normal(k_txt, (B, D), dtype=jnp.float32)
    # Deterministic xavier_normal_ for Linear(2D -> D, bias=False):
    # std = sqrt(2 / (fan_in + fan_out)) = sqrt(2 / (3D))
    xavier_std = math.sqrt(2.0 / (2 * D + D))
    weight = xavier_std * jax.random.normal(k_w, (D, 2 * D), dtype=jnp.float32)
    w_img, w_txt = prepare_gate_weight(weight, image_emb.dtype)  # init-time repack

    out = gate_forward(image_emb, text_emb, w_img, w_txt, precision=hi)
    out = jax.block_until_ready(out)
    ref = gate_reference(image_emb, text_emb, weight, precision=hi)
    assert out.shape == (B, D)
    assert jnp.allclose(out, ref, atol=2e-5, rtol=2e-5), "resident path mismatch"

    # ---- Test 2: N-tiled path (forced at small shapes; real trigger is the
    # >24 MiB resident-weight threshold for v7x's 64 MiB VMEM) ----------------
    B2, D2 = 32, 256
    image2 = jax.random.normal(k_img2, (B2, D2), dtype=jnp.float32)
    text2 = jax.random.normal(k_txt2, (B2, D2), dtype=jnp.float32)
    std2 = math.sqrt(2.0 / (3 * D2))
    weight2 = std2 * jax.random.normal(k_w2, (D2, 2 * D2), dtype=jnp.float32)
    w_img2, w_txt2 = prepare_gate_weight(weight2, image2.dtype)

    out2 = gate_forward(image2, text2, w_img2, w_txt2, block_n=128, precision=hi)
    out2 = jax.block_until_ready(out2)
    ref2 = gate_reference(image2, text2, weight2, precision=hi)
    assert out2.shape == (B2, D2)
    assert jnp.allclose(out2, ref2, atol=2e-5, rtol=2e-5), "n-tiled path mismatch"

    print("KERNEL_OK")
</pallas_src>

<mosaic_0001>
module attributes {stable_mosaic.version = 11 : i64} {
  func.func @gate_kernel(%arg0: i32, %arg1: memref<32x128xf32, #tpu.memory_space<vmem>>, %arg2: memref<32x128xf32, #tpu.memory_space<vmem>>, %arg3: memref<128x128xf32, #tpu.memory_space<vmem>>, %arg4: memref<128x128xf32, #tpu.memory_space<vmem>>, %arg5: memref<32x128xf32, #tpu.memory_space<vmem>>) attributes {dimension_semantics = [#tpu.dimension_semantics<parallel>], iteration_bounds = array<i64: 2>, scalar_prefetch = 0 : i64, scratch_operands = 0 : i64, tpu.core_type = #tpu.core_type<tc>, window_params = [{transform_indices = @transform_0, window_bounds = array<i64: 32, 128>}, {transform_indices = @transform_1, window_bounds = array<i64: 32, 128>}, {pipeline_mode = #tpu.pipeline_mode<synchronous>, transform_indices = @transform_2, window_bounds = array<i64: 128, 128>}, {pipeline_mode = #tpu.pipeline_mode<synchronous>, transform_indices = @transform_3, window_bounds = array<i64: 128, 128>}, {transform_indices = @transform_4, window_bounds = array<i64: 32, 128>}]} {
    %c0 = arith.constant 0 : index
    %c0_0 = arith.constant 0 : index
    %0 = vector.load %arg1[%c0, %c0_0] : memref<32x128xf32, #tpu.memory_space<vmem>>, vector<32x128xf32>
    %c0_1 = arith.constant 0 : index
    %c0_2 = arith.constant 0 : index
    %1 = vector.load %arg2[%c0_1, %c0_2] : memref<32x128xf32, #tpu.memory_space<vmem>>, vector<32x128xf32>
    %c0_3 = arith.constant 0 : index
    %c0_4 = arith.constant 0 : index
    %2 = vector.load %arg3[%c0_3, %c0_4] : memref<128x128xf32, #tpu.memory_space<vmem>>, vector<128x128xf32>
    %cst = arith.constant dense<0.000000e+00> : vector<32x128xf32>
    %3 = tpu.matmul %0, %2, %cst {dimension_numbers = #tpu.dot_dimension_numbers<[1], [0], [0], [1], [0, 0, 1, 1], [], []>, precision = #tpu.contract_precision<fp32>} : vector<32x128xf32>, vector<128x128xf32>, vector<32x128xf32> -> vector<32x128xf32>
    %c0_5 = arith.constant 0 : index
    %c0_6 = arith.constant 0 : index
    %4 = vector.load %arg4[%c0_5, %c0_6] : memref<128x128xf32, #tpu.memory_space<vmem>>, vector<128x128xf32>
    %cst_7 = arith.constant dense<0.000000e+00> : vector<32x128xf32>
    %5 = tpu.matmul %1, %4, %cst_7 {dimension_numbers = #tpu.dot_dimension_numbers<[1], [0], [0], [1], [0, 0, 1, 1], [], []>, precision = #tpu.contract_precision<fp32>} : vector<32x128xf32>, vector<128x128xf32>, vector<32x128xf32> -> vector<32x128xf32>
    %6 = arith.addf %3, %5 : vector<32x128xf32>
    %cst_8 = arith.constant 5.000000e-01 : f32
    %7 = vector.broadcast %cst_8 : f32 to vector<32x128xf32>
    %8 = arith.mulf %7, %6 : vector<32x128xf32>
    %9 = math.tanh %8 : vector<32x128xf32>
    %cst_9 = arith.constant 5.000000e-01 : f32
    %10 = vector.broadcast %cst_9 : f32 to vector<32x128xf32>
    %11 = arith.mulf %10, %9 : vector<32x128xf32>
    %cst_10 = arith.constant 5.000000e-01 : f32
    %12 = vector.broadcast %cst_10 : f32 to vector<32x128xf32>
    %13 = arith.addf %11, %12 : vector<32x128xf32>
    %14 = arith.subf %0, %1 : vector<32x128xf32>
    %15 = arith.mulf %13, %14 : vector<32x128xf32>
    %16 = arith.addf %1, %15 : vector<32x128xf32>
    %c0_11 = arith.constant 0 : index
    %c0_12 = arith.constant 0 : index
    %17 = vector.load %arg5[%c0_11, %c0_12] : memref<32x128xf32, #tpu.memory_space<vmem>>, vector<32x128xf32>
    tpu.vector_store %arg5[%c0_11, %c0_12], %16 {strides = array<i32>} : memref<32x128xf32, #tpu.memory_space<vmem>>, vector<32x128xf32>,
    return
  }
  func.func @transform_0(%arg0: i32) -> (i32, i32) {
    %c0_i32 = arith.constant 0 : i32
    %c0_i32_0 = arith.constant 0 : i32
    return %arg0, %c0_i32 : i32, i32
  }
  func.func @transform_1(%arg0: i32) -> (i32, i32) {
    %c0_i32 = arith.constant 0 : i32
    %c0_i32_0 = arith.constant 0 : i32
    return %arg0, %c0_i32 : i32, i32
  }
  func.func @transform_2(%arg0: i32) -> (i32, i32) {
    %c0_i32 = arith.constant 0 : i32
    %c0_i32_0 = arith.constant 0 : i32
    %c0_i32_1 = arith.constant 0 : i32
    return %c0_i32, %c0_i32_0 : i32, i32
  }
  func.func @transform_3(%arg0: i32) -> (i32, i32) {
    %c0_i32 = arith.constant 0 : i32
    %c0_i32_0 = arith.constant 0 : i32
    %c0_i32_1 = arith.constant 0 : i32
    return %c0_i32, %c0_i32_0 : i32, i32
  }
  func.func @transform_4(%arg0: i32) -> (i32, i32) {
    %c0_i32 = arith.constant 0 : i32
    %c0_i32_0 = arith.constant 0 : i32
    return %arg0, %c0_i32 : i32, i32
  }
}

</mosaic_0001>

<llo_original>
// kernel: tpu_custom_call.1
$region0: #{tpu_custom_call.1}
  #allocation0 [shape = 'u32[]', space=smem, size = 0x4, offset = 0x4, fixed_abs, tag = 'smem constant byte address 0x4 - core index']
  #allocation1 [shape = 'u32[72,128]{1,0:T(1,128)}', space=vmem, size = 0x9000, scoped, tag = 'internal scratch']
  %s0 = inlined_call_operand.hbm [shape: f32[64,128], index: 0, kind: input, shape index: {}]
  %s1 = inlined_call_operand.hbm [shape: f32[64,128], index: 1, kind: input, shape index: {}]
  %s2 = inlined_call_operand.hbm [shape: f32[128,128], index: 2, kind: input, shape index: {}]
  %s3 = inlined_call_operand.hbm [shape: f32[128,128], index: 3, kind: input, shape index: {}]
  %s4 = inlined_call_operand.hbm [shape: f32[64,128], index: 4, kind: output, shape index: {}]
  %s5 = sld [smem:[#allocation0]]
  $region65: #{tpu_custom_call.1} parent=0
    _
  %s7 = ssub.s32 1, %s5
  %s8 = scalar_select 0, %s7, %s5
  $region1: #{tpu_custom_call.1} parent=0
    #allocation2 [shape = 'u8[32768]{0}', space=vmem, size = 0x8000, scoped, tag = 'input window, operand 0']
    #allocation3 [shape = 's32[2]{0}', space=sflag, size = 0x8, scoped, tag = 'scoped memory for tpu_custom_call.1']
    #allocation4 [shape = 's32[2]{0}', space=sflag, size = 0x8, scoped, tag = 'scoped memory for tpu_custom_call.1']
    #allocation5 [shape = 'u8[32768]{0}', space=vmem, size = 0x8000, scoped, tag = 'input window, operand 1']
    #allocation6 [shape = 's32[2]{0}', space=sflag, size = 0x8, scoped, tag = 'scoped memory for tpu_custom_call.1']
    #allocation7 [shape = 'u8[65536]{0}', space=vmem, size = 0x10000, scoped, tag = 'input window, operand 2, single buffered']
    #allocation8 [shape = 'u8[65536]{0}', space=vmem, size = 0x10000, scoped, tag = 'input window, operand 3, single buffered']
    #allocation9 [shape = 's32[1]{0}', space=sflag, size = 0x4, scoped, tag = 'scoped memory for tpu_custom_call.1']
    #allocation10 [shape = 'u8[32768]{0}', space=vmem, size = 0x8000, scoped, tag = 'output window, operand 0']
    %9 = vsyncpa [#allocation3], 0
    %s10 = scalar_lea.sflag [#allocation3], 1
    %11 = vsyncpa %s10, 0
    %12 = vsyncpa [#allocation6], 0
    %s13 = scalar_lea.sflag [#allocation6], 1
    %14 = vsyncpa %s13, 0
    %15 = vsyncpa [#allocation9], 0
    %16 = vsyncpa [#allocation4], 0
    %s17 = scalar_lea.sflag [#allocation4], 1
    %18 = vsyncpa %s17, 0
    loop: start=0, step=1, limit=4
    $region2: #{tpu_custom_call.1} parent=1 // loop_pre_header
      _
    $region3: #{tpu_custom_call.1} parent=1 // loop_header
      %s20 = sphi 0, %s24
      %p21 = scmp.ge.s32.totalorder %s20, 4
      %s30 = sphi 0, %s32
      %s33 = sphi 0, %s30
      %s34 = sphi 0, %s33
      %s50 = sphi 0, %s34
      %s56 = sphi 0, %s58
      %s59 = sphi 0, %s56
      %s60 = sphi 0, %s59
      %s76 = sphi 0, %s60
      %s80 = sphi 0, %s80
      %s82 = sphi 0, %s80
      %s83 = sphi 0, %s82
      %s97 = sphi 0, %s83
      %s101 = sphi 0, %s101
      %s103 = sphi 0, %s101
      %s104 = sphi 0, %s103
      %s118 = sphi 0, %s104
      %s124 = sphi 0, %s126
      %s127 = sphi 0, %s124
      %s128 = sphi 0, %s127
      %s144 = sphi 0, %s128
    $region4: #{tpu_custom_call.1} parent=1 // loop_header_branch
      %23 = sbr.rel (%p21) target = $region8
    $region5: #{tpu_custom_call.1} parent=1 // loop_body
      %s25 = ssub.s32 %s20, 1
      %s26 = ssub.s32 %s20, 2
      %s27 = sadd.s32 %s20, 1
      %s28 = ssub.s32 %s20, %s27
      %p29 = scmp.eq.s32.totalorder %s28, 0
      %s31 = sadd.s32 %s30, 1
      %s32 = scalar_select %p29, %s30, %s31
      %p35 = pneg %p29
      %p36 = scmp.eq.s32.totalorder %s20, 1
      %p37 = por %p35, %p36
      %p38 = scmp.ne.s32.totalorder %s30, %s33
      %p39 = scmp.eq.s32.totalorder %s20, 0
      %p40 = por %p38, %p39
      %p41 = scmp.ne.s32.totalorder %s30, %s33
      %p42 = scmp.eq.s32.totalorder %s25, 1
      %p43 = por %p41, %p42
      %p44 = scmp.ne.s32.totalorder %s33, %s34
      %p45 = scmp.eq.s32.totalorder %s25, 0
      %p46 = por %p44, %p45
      %p47 = scmp.ne.s32.totalorder %s33, %s34
      %p48 = scmp.eq.s32.totalorder %s26, 1
      %p49 = por %p47, %p48
      %p51 = scmp.ne.s32.totalorder %s34, %s50
      %p52 = scmp.eq.s32.totalorder %s26, 0
      %p53 = por %p51, %p52
      %s54 = ssub.s32 %s20, %s27
      %p55 = scmp.eq.s32.totalorder %s54, 0
      %s57 = sadd.s32 %s56, 1
      %s58 = scalar_select %p55, %s56, %s57
      %p61 = pneg %p55
      %p62 = scmp.eq.s32.totalorder %s20, 1
      %p63 = por %p61, %p62
      %p64 = scmp.ne.s32.totalorder %s56, %s59
      %p65 = scmp.eq.s32.totalorder %s20, 0
      %p66 = por %p64, %p65
      %p67 = scmp.ne.s32.totalorder %s56, %s59
      %p68 = scmp.eq.s32.totalorder %s25, 1
      %p69 = por %p67, %p68
      %p70 = scmp.ne.s32.totalorder %s59, %s60
      %p71 = scmp.eq.s32.totalorder %s25, 0
      %p72 = por %p70, %p71
      %p73 = scmp.ne.s32.totalorder %s59, %s60
      %p74 = scmp.eq.s32.totalorder %s26, 1
      %p75 = por %p73, %p74
      %p77 = scmp.ne.s32.totalorder %s60, %s76
      %p78 = scmp.eq.s32.totalorder %s26, 0
      %p79 = por %p77, %p78
      %s81 = sadd.s32 %s80, 1
      %p84 = scmp.eq.s32.totalorder %s20, 1
      %p85 = scmp.ne.s32.totalorder %s80, %s82
      %p86 = scmp.eq.s32.totalorder %s20, 0
      %p87 = por %p85, %p86
      %p88 = scmp.ne.s32.totalorder %s80, %s82
      %p89 = scmp.eq.s32.totalorder %s25, 1
      %p90 = por %p88, %p89
      %p91 = scmp.ne.s32.totalorder %s82, %s83
      %p92 = scmp.eq.s32.totalorder %s25, 0
      %p93 = por %p91, %p92
      %p94 = scmp.ne.s32.totalorder %s82, %s83
      %p95 = scmp.eq.s32.totalorder %s26, 1
      %p96 = por %p94, %p95
      %p98 = scmp.ne.s32.totalorder %s83, %s97
      %p99 = scmp.eq.s32.totalorder %s26, 0
      %p100 = por %p98, %p99
      %s102 = sadd.s32 %s101, 1
      %p105 = scmp.eq.s32.totalorder %s20, 1
      %p106 = scmp.ne.s32.totalorder %s101, %s103
      %p107 = scmp.eq.s32.totalorder %s20, 0
      %p108 = por %p106, %p107
      %p109 = scmp.ne.s32.totalorder %s101, %s103
      %p110 = scmp.eq.s32.totalorder %s25, 1
      %p111 = por %p109, %p110
      %p112 = scmp.ne.s32.totalorder %s103, %s104
      %p113 = scmp.eq.s32.totalorder %s25, 0
      %p114 = por %p112, %p113
      %p115 = scmp.ne.s32.totalorder %s103, %s104
      %p116 = scmp.eq.s32.totalorder %s26, 1
      %p117 = por %p115, %p116
      %p119 = scmp.ne.s32.totalorder %s104, %s118
      %p120 = scmp.eq.s32.totalorder %s26, 0
      %p121 = por %p119, %p120
      %s122 = ssub.s32 %s20, %s27
      %p123 = scmp.eq.s32.totalorder %s122, 0
      %s125 = sadd.s32 %s124, 1
      %s126 = scalar_select %p123, %s124, %s125
      %p129 = pneg %p123
      %p130 = scmp.eq.s32.totalorder %s20, 1
      %p131 = por %p129, %p130
      %p132 = scmp.ne.s32.totalorder %s124, %s127
      %p133 = scmp.eq.s32.totalorder %s20, 0
      %p134 = por %p132, %p133
      %p135 = scmp.ne.s32.totalorder %s124, %s127
      %p136 = scmp.eq.s32.totalorder %s25, 1
      %p137 = por %p135, %p136
      %p138 = scmp.ne.s32.totalorder %s127, %s128
      %p139 = scmp.eq.s32.totalorder %s25, 0
      %p140 = por %p138, %p139
      %p141 = scmp.ne.s32.totalorder %s127, %s128
      %p142 = scmp.eq.s32.totalorder %s26, 1
      %p143 = por %p141, %p142
      %p145 = scmp.ne.s32.totalorder %s128, %s144
      %p146 = scmp.eq.s32.totalorder %s26, 0
      %p147 = por %p145, %p146
      %p148 = scmp.le.s32.totalorder 1, %s20
      %p149 = scmp.lt.s32.totalorder %s20, 3
      %p150 = pnand %p148, %p149
      %p151 = pneg %p150
      // Predicated region
      $region9: #{tpu_custom_call.1} parent=5 // pred_check
        _
      $region10: #{tpu_custom_call.1} parent=5 // pred_check_branch
        %153 = sbr.rel (%p150) target = $region12
      $region11: #{tpu_custom_call.1} parent=5 // pred_region
        %s154 = ssub.s32 %s20, 1
        // Predicated region
        $region13: #{tpu_custom_call.1} parent=11 // pred_check
          %p155 = pneg %p93
        $region14: #{tpu_custom_call.1} parent=11 // pred_check_branch
          %157 = sbr.rel (%p155) target = $region16
        $region15: #{tpu_custom_call.1} parent=11 // pred_region
          %159 = vsyncadd [#allocation6], 0
          %s160 = sshll.u32 %s2, 4
          %s161 = int_to_ptr.hbm [resolvable:$true] %s160
          %s162 = sshll.u32 [#allocation7], 4
          %s163 = int_to_ptr.vmem [resolvable:$true] %s162
          %168 = dma.hbm_to_vmem [thread:$0]  %s161, 2048, %s163, [#allocation6], 128, 128, 8
        $region16: #{tpu_custom_call.1} parent=11 // pred_fallthru
          _
        // Predicated region
        $region17: #{tpu_custom_call.1} parent=11 // pred_check
          %p169 = pneg %p114
        $region18: #{tpu_custom_call.1} parent=11 // pred_check_branch
          %171 = sbr.rel (%p169) target = $region20
        $region19: #{tpu_custom_call.1} parent=11 // pred_region
          %173 = vsyncadd [#allocation9], 0
          %s174 = sshll.u32 %s3, 4
          %s175 = int_to_ptr.hbm [resolvable:$true] %s174
          %s176 = sshll.u32 [#allocation8], 4
          %s177 = int_to_ptr.vmem [resolvable:$true] %s176
          %182 = dma.hbm_to_vmem [thread:$0]  %s175, 2048, %s177, [#allocation9], 128, 128, 8
        $region20: #{tpu_custom_call.1} parent=11 // pred_fallthru
          _
      $region12: #{tpu_custom_call.1} parent=5 // pred_fallthru
        _
      %p183 = scmp.lt.s32.totalorder %s20, 2
      // Predicated region
      $region21: #{tpu_custom_call.1} parent=5 // pred_check
        %p184 = pneg %p183
      $region22: #{tpu_custom_call.1} parent=5 // pred_check_branch
        %186 = sbr.rel (%p184) target = $region24
      $region23: #{tpu_custom_call.1} parent=5 // pred_region
        // Predicated region
        $region25: #{tpu_custom_call.1} parent=23 // pred_check
          %p187 = pneg %p40
        $region26: #{tpu_custom_call.1} parent=23 // pred_check_branch
          %189 = sbr.rel (%p187) target = $region28
        $region27: #{tpu_custom_call.1} parent=23 // pred_region
          %s190 = sand.u32 %s30, 1
          %s191 = scalar_lea.sflag [#allocation3], %s190
          %s192 = sand.u32 %s30, 1
          %s193 = smul.addr %s192, 32
          %s194 = scalar_lea.vmem [#allocation2], %s193
          %s195 = smul.u32 4, %s20
          %197 = vsyncadd %s191, 0
          %s198 = smul.addr %s195, 8
          %s199 = scalar_lea.hbm %s0, %s198
          %s200 = sshll.u32 %s199, 4
          %s201 = int_to_ptr.hbm [resolvable:$true] %s200
          %s202 = sshll.u32 %s194, 4
          %s203 = int_to_ptr.vmem [resolvable:$true] %s202
          %208 = dma.hbm_to_vmem [thread:$0]  %s201, 512, %s203, %s191, 128, 128, 8
        $region28: #{tpu_custom_call.1} parent=23 // pred_fallthru
          _
        // Predicated region
        $region29: #{tpu_custom_call.1} parent=23 // pred_check
          %p209 = pneg %p66
        $region30: #{tpu_custom_call.1} parent=23 // pred_check_branch
          %211 = sbr.rel (%p209) target = $region32
        $region31: #{tpu_custom_call.1} parent=23 // pred_region
          %s212 = sand.u32 %s20, 1
          %s213 = scalar_lea.sflag [#allocation6], %s212
          %s214 = sand.u32 %s56, 1
          %s215 = smul.addr %s214, 32
          %s216 = scalar_lea.vmem [#allocation5], %s215
          %s217 = smul.u32 4, %s20
          %219 = vsyncadd %s213, 0
          %s220 = smul.addr %s217, 8
          %s221 = scalar_lea.hbm %s1, %s220
          %s222 = sshll.u32 %s221, 4
          %s223 = int_to_ptr.hbm [resolvable:$true] %s222
          %s224 = sshll.u32 %s216, 4
          %s225 = int_to_ptr.vmem [resolvable:$true] %s224
          %230 = dma.hbm_to_vmem [thread:$0]  %s223, 512, %s225, %s213, 128, 128, 8
        $region32: #{tpu_custom_call.1} parent=23 // pred_fallthru
          _
      $region24: #{tpu_custom_call.1} parent=5 // pred_fallthru
        _
      %p231 = scmp.le.s32.totalorder 1, %s20
      %p232 = scmp.lt.s32.totalorder %s20, 3
      %p233 = pnand %p231, %p232
      %p234 = pneg %p233
      // Predicated region
      $region33: #{tpu_custom_call.1} parent=5 // pred_check
        _
      $region34: #{tpu_custom_call.1} parent=5 // pred_check_branch
        %236 = sbr.rel (%p233) target = $region36
      $region35: #{tpu_custom_call.1} parent=5 // pred_region
        %s237 = ssub.s32 %s20, 1
        %s238 = sand.u32 %s33, 1
        %s239 = scalar_lea.sflag [#allocation3], %s238
        %s240 = sand.u32 %s33, 1
        %s241 = smul.addr %s240, 32
        %s242 = scalar_lea.vmem [#allocation2], %s241
        // Predicated region
        $region37: #{tpu_custom_call.1} parent=35 // pred_check
          %p243 = pneg %p46
        $region38: #{tpu_custom_call.1} parent=35 // pred_check_branch
          %245 = sbr.rel (%p243) target = $region40
        $region39: #{tpu_custom_call.1} parent=35 // pred_region
          %247 = dma.done %s239, 512
        $region40: #{tpu_custom_call.1} parent=35 // pred_fallthru
          _
        %s248 = sand.u32 %s25, 1
        %s249 = scalar_lea.sflag [#allocation6], %s248
        %s250 = sand.u32 %s59, 1
        %s251 = smul.addr %s250, 32
        %s252 = scalar_lea.vmem [#allocation5], %s251
        // Predicated region
        $region41: #{tpu_custom_call.1} parent=35 // pred_check
          %p253 = pneg %p72
        $region42: #{tpu_custom_call.1} parent=35 // pred_check_branch
          %255 = sbr.rel (%p253) target = $region44
        $region43: #{tpu_custom_call.1} parent=35 // pred_region
          %257 = dma.done %s249, 512
        $region44: #{tpu_custom_call.1} parent=35 // pred_fallthru
          _
        // Predicated region
        $region45: #{tpu_custom_call.1} parent=35 // pred_check
          %p258 = pneg %p93
        $region46: #{tpu_custom_call.1} parent=35 // pred_check_branch
          %260 = sbr.rel (%p258) target = $region48
        $region47: #{tpu_custom_call.1} parent=35 // pred_region
          %262 = dma.done [#allocation6], 2048
        $region48: #{tpu_custom_call.1} parent=35 // pred_fallthru
          _
        // Predicated region
        $region49: #{tpu_custom_call.1} parent=35 // pred_check
          %p263 = pneg %p114
        $region50: #{tpu_custom_call.1} parent=35 // pred_check_branch
          %265 = sbr.rel (%p263) target = $region52
        $region51: #{tpu_custom_call.1} parent=35 // pred_region
          %267 = dma.done [#allocation9], 2048
        $region52: #{tpu_custom_call.1} parent=35 // pred_fallthru
          _
        %s268 = sand.u32 %s33, 1
        %s269 = scalar_lea.sflag [#allocation3], %s268
        %s270 = sand.u32 %s33, 1
        %s271 = smul.addr %s270, 32
        %s272 = scalar_lea.vmem [#allocation2], %s271
        %p273 = pneg %p46
        %p274 = pneg %p43
        %s275 = sand.u32 %s25, 1
        %s276 = scalar_lea.sflag [#allocation6], %s275
        %s277 = sand.u32 %s59, 1
        %s278 = smul.addr %s277, 32
        %s279 = scalar_lea.vmem [#allocation5], %s278
        %p280 = pneg %p72
        %p281 = pneg %p69
        %p282 = pneg %p93
        %p283 = pneg %p90
        %p284 = pneg %p114
        %p285 = pneg %p111
        %p286 = pneg %p140
        %p287 = pneg %p137
        %s288 = sand.u32 %s127, 1
        %s289 = scalar_lea.sflag [#allocation4], %s288
        %s290 = sand.u32 %s127, 1
        %s291 = smul.addr %s290, 32
        %s292 = scalar_lea.vmem [#allocation10], %s291
        %s293 = smul.u32 4, %s25
        %s294 = smul.u32 4, %s25
        %s295 = smul.u32 4, %s25
        %v296 = vld [vmem:[%s242] sm:$0xff]
        %v297 = vld [vmem:[%s242 + $0x8] sm:$0xff]
        %v298 = vld [vmem:[%s242 + $0x10] sm:$0xff]
        %v299 = vld [vmem:[%s242 + $0x18] sm:$0xff]
        %v300 = vld [vmem:[%s252] sm:$0xff]
        %v301 = vld [vmem:[%s252 + $0x8] sm:$0xff]
        %v302 = vld [vmem:[%s252 + $0x10] sm:$0xff]
        %v303 = vld [vmem:[%s252 + $0x18] sm:$0xff]
        %v304 = vld [vmem:[#allocation7] sm:$0xff]
        %v305 = vld [vmem:[#allocation7 + $0x8] sm:$0xff]
        %v306 = vld [vmem:[#allocation7 + $0x10] sm:$0xff]
        %v307 = vld [vmem:[#allocation7 + $0x18] sm:$0xff]
        %v308 = vld [vmem:[#allocation7 + $0x20] sm:$0xff]
        %v309 = vld [vmem:[#allocation7 + $0x28] sm:$0xff]
        %v310 = vld [vmem:[#allocation7 + $0x30] sm:$0xff]
        %v311 = vld [vmem:[#allocation7 + $0x38] sm:$0xff]
        %v312 = vld [vmem:[#allocation7 + $0x40] sm:$0xff]
        %v313 = vld [vmem:[#allocation7 + $0x48] sm:$0xff]
        %v314 = vld [vmem:[#allocation7 + $0x50] sm:$0xff]
        %v315 = vld [vmem:[#allocation7 + $0x58] sm:$0xff]
        %v316 = vld [vmem:[#allocation7 + $0x60] sm:$0xff]
        %v317 = vld [vmem:[#allocation7 + $0x68] sm:$0xff]
        %v318 = vld [vmem:[#allocation7 + $0x70] sm:$0xff]
        %v319 = vld [vmem:[#allocation7 + $0x78] sm:$0xff]
        %v320 = vld [vmem:[#allocation8] sm:$0xff]
        %v321 = vld [vmem:[#allocation8 + $0x8] sm:$0xff]
        %v322 = vld [vmem:[#allocation8 + $0x10] sm:$0xff]
        %v323 = vld [vmem:[#allocation8 + $0x18] sm:$0xff]
        %v324 = vld [vmem:[#allocation8 + $0x20] sm:$0xff]
        %v325 = vld [vmem:[#allocation8 + $0x28] sm:$0xff]
        %v326 = vld [vmem:[#allocation8 + $0x30] sm:$0xff]
        %v327 = vld [vmem:[#allocation8 + $0x38] sm:$0xff]
        %v328 = vld [vmem:[#allocation8 + $0x40] sm:$0xff]
        %v329 = vld [vmem:[#allocation8 + $0x48] sm:$0xff]
        %v330 = vld [vmem:[#allocation8 + $0x50] sm:$0xff]
        %v331 = vld [vmem:[#allocation8 + $0x58] sm:$0xff]
        %v332 = vld [vmem:[#allocation8 + $0x60] sm:$0xff]
        %v333 = vld [vmem:[#allocation8 + $0x68] sm:$0xff]
        %v334 = vld [vmem:[#allocation8 + $0x70] sm:$0xff]
        %v335 = vld [vmem:[#allocation8 + $0x78] sm:$0xff]
        %v336 = vand.u32 %v335, 4294901760
        %337 = vmatpush.msra.mxu0 %v336
        %v338 = vand.u32 %v334, 4294901760
        %339 = vmatpush.msra.mxu0 %v338
        %v340 = vand.u32 %v333, 4294901760
        %341 = vmatpush.msra.mxu0 %v340
        %v342 = vand.u32 %v332, 4294901760
        %343 = vmatpush.msra.mxu0 %v342
        %v344 = vand.u32 %v331, 4294901760
        %345 = vmatpush.msra.mxu0 %v344
        %v346 = vand.u32 %v330, 4294901760
        %347 = vmatpush.msra.mxu0 %v346
        %v348 = vand.u32 %v329, 4294901760
        %349 = vmatpush.msra.mxu0 %v348
        %v350 = vand.u32 %v328, 4294901760
        %351 = vmatpush.msra.mxu0 %v350
        %v352 = vand.u32 %v327, 4294901760
        %353 = vmatpush.msra.mxu0 %v352
        %v354 = vand.u32 %v326, 4294901760
        %355 = vmatpush.msra.mxu0 %v354
        %v356 = vand.u32 %v325, 4294901760
        %357 = vmatpush.msra.mxu0 %v356
        %v358 = vand.u32 %v324, 4294901760
        %359 = vmatpush.msra.mxu0 %v358
        %v360 = vand.u32 %v323, 4294901760
        %361 = vmatpush.msra.mxu0 %v360
        %v362 = vand.u32 %v322, 4294901760
        %363 = vmatpush.msra.mxu0 %v362
        %v364 = vand.u32 %v321, 4294901760
        %365 = vmatpush.msra.mxu0 %v364
        %v366 = vand.u32 %v320, 4294901760
        %367 = vmatpush.msra.mxu0 %v366
        %v368 = vand.u32 %v300, 4294901760
        %v369 = vsub.f32 %v300, %v368
        %v370 = vand.u32 %v369, 4294901760
        %v371 = vsub.f32 %v369, %v370
        %v372 = vand.u32 %v371, 4294901760
        %373 = vmatmul.f32.gmra.mxu0 %v372
        %v374 = vpop.f32.mrf.mxu0
        %v375 = vadd.f32 0.0, %v374
        %v376 = vand.u32 %v301, 4294901760
        %v377 = vsub.f32 %v301, %v376
        %v378 = vand.u32 %v377, 4294901760
        %v379 = vsub.f32 %v377, %v378
        %v380 = vand.u32 %v379, 4294901760
        %381 = vmatmul.f32.gmra.mxu0 %v380
        %v382 = vpop.f32.mrf.mxu0
        %v383 = vadd.f32 0.0, %v382
        %v384 = vand.u32 %v302, 4294901760
        %v385 = vsub.f32 %v302, %v384
        %v386 = vand.u32 %v385, 4294901760
        %v387 = vsub.f32 %v385, %v386
        %v388 = vand.u32 %v387, 4294901760
        %389 = vmatmul.f32.gmra.mxu0 %v388
        %v390 = vpop.f32.mrf.mxu0
        %v391 = vadd.f32 0.0, %v390
        %v392 = vand.u32 %v303, 4294901760
        %v393 = vsub.f32 %v303, %v392
        %v394 = vand.u32 %v393, 4294901760
        %v395 = vsub.f32 %v393, %v394
        %v396 = vand.u32 %v395, 4294901760
        %397 = vmatmul.f32.gmra.mxu0 %v396
        %v398 = vpop.f32.mrf.mxu0
        %v399 = vadd.f32 0.0, %v398
        %400 = vdwg.mxu0
        %v401 = vand.u32 %v335, 4294901760
        %v402 = vsub.f32 %v335, %v401
        %v403 = vand.u32 %v402, 4294901760
        %v404 = vsub.f32 %v402, %v403
        %v405 = vand.u32 %v404, 4294901760
        %406 = vmatpush.msra.mxu0 %v405
        %v407 = vand.u32 %v334, 4294901760
        %v408 = vsub.f32 %v334, %v407
        %v409 = vand.u32 %v408, 4294901760
        %v410 = vsub.f32 %v408, %v409
        %v411 = vand.u32 %v410, 4294901760
        %412 = vmatpush.msra.mxu0 %v411
        %v413 = vand.u32 %v333, 4294901760
        %v414 = vsub.f32 %v333, %v413
        %v415 = vand.u32 %v414, 4294901760
        %v416 = vsub.f32 %v414, %v415
        %v417 = vand.u32 %v416, 4294901760
        %418 = vmatpush.msra.mxu0 %v417
        %v419 = vand.u32 %v332, 4294901760
        %v420 = vsub.f32 %v332, %v419
        %v421 = vand.u32 %v420, 4294901760
        %v422 = vsub.f32 %v420, %v421
        %v423 = vand.u32 %v422, 4294901760
        %424 = vmatpush.msra.mxu0 %v423
        %v425 = vand.u32 %v331, 4294901760
        %v426 = vsub.f32 %v331, %v425
        %v427 = vand.u32 %v426, 4294901760
        %v428 = vsub.f32 %v426, %v427
        %v429 = vand.u32 %v428, 4294901760
        %430 = vmatpush.msra.mxu0 %v429
        %v431 = vand.u32 %v330, 4294901760
        %v432 = vsub.f32 %v330, %v431
        %v433 = vand.u32 %v432, 4294901760
        %v434 = vsub.f32 %v432, %v433
        %v435 = vand.u32 %v434, 4294901760
        %436 = vmatpush.msra.mxu0 %v435
        %v437 = vand.u32 %v329, 4294901760
        %v438 = vsub.f32 %v329, %v437
        %v439 = vand.u32 %v438, 4294901760
        %v440 = vsub.f32 %v438, %v439
        %v441 = vand.u32 %v440, 4294901760
        %442 = vmatpush.msra.mxu0 %v441
        %v443 = vand.u32 %v328, 4294901760
        %v444 = vsub.f32 %v328, %v443
        %v445 = vand.u32 %v444, 4294901760
        %v446 = vsub.f32 %v444, %v445
        %v447 = vand.u32 %v446, 4294901760
        %448 = vmatpush.msra.mxu0 %v447
        %v449 = vand.u32 %v327, 4294901760
        %v450 = vsub.f32 %v327, %v449
        %v451 = vand.u32 %v450, 4294901760
        %v452 = vsub.f32 %v450, %v451
        %v453 = vand.u32 %v452, 4294901760
        %454 = vmatpush.msra.mxu0 %v453
        %v455 = vand.u32 %v326, 4294901760
        %v456 = vsub.f32 %v326, %v455
        %v457 = vand.u32 %v456, 4294901760
        %v458 = vsub.f32 %v456, %v457
        %v459 = vand.u32 %v458, 4294901760
        %460 = vmatpush.msra.mxu0 %v459
        %v461 = vand.u32 %v325, 4294901760
        %v462 = vsub.f32 %v325, %v461
        %v463 = vand.u32 %v462, 4294901760
        %v464 = vsub.f32 %v462, %v463
        %v465 = vand.u32 %v464, 4294901760
        %466 = vmatpush.msra.mxu0 %v465
        %v467 = vand.u32 %v324, 4294901760
        %v468 = vsub.f32 %v324, %v467
        %v469 = vand.u32 %v468, 4294901760
        %v470 = vsub.f32 %v468, %v469
        %v471 = vand.u32 %v470, 4294901760
        %472 = vmatpush.msra.mxu0 %v471
        %v473 = vand.u32 %v323, 4294901760
        %v474 = vsub.f32 %v323, %v473
        %v475 = vand.u32 %v474, 4294901760
        %v476 = vsub.f32 %v474, %v475
        %v477 = vand.u32 %v476, 4294901760
        %478 = vmatpush.msra.mxu0 %v477
        %v479 = vand.u32 %v322, 4294901760
        %v480 = vsub.f32 %v322, %v479
        %v481 = vand.u32 %v480, 4294901760
        %v482 = vsub.f32 %v480, %v481
        %v483 = vand.u32 %v482, 4294901760
        %484 = vmatpush.msra.mxu0 %v483
        %v485 = vand.u32 %v321, 4294901760
        %v486 = vsub.f32 %v321, %v485
        %v487 = vand.u32 %v486, 4294901760
        %v488 = vsub.f32 %v486, %v487
        %v489 = vand.u32 %v488, 4294901760
        %490 = vmatpush.msra.mxu0 %v489
        %v491 = vand.u32 %v320, 4294901760
        %v492 = vsub.f32 %v320, %v491
        %v493 = vand.u32 %v492, 4294901760
        %v494 = vsub.f32 %v492, %v493
        %v495 = vand.u32 %v494, 4294901760
        %496 = vmatpush.msra.mxu0 %v495
        %v497 = vand.u32 %v300, 4294901760
        %498 = vmatmul.f32.gmra.mxu0 %v497
        %v499 = vpop.f32.mrf.mxu0
        %v500 = vadd.f32 %v375, %v499
        %v501 = vand.u32 %v301, 4294901760
        %502 = vmatmul.f32.gmra.mxu0 %v501
        %v503 = vpop.f32.mrf.mxu0
        %v504 = vadd.f32 %v383, %v503
        %v505 = vand.u32 %v302, 4294901760
        %506 = vmatmul.f32.gmra.mxu0 %v505
        %v507 = vpop.f32.mrf.mxu0
        %v508 = vadd.f32 %v391, %v507
        %v509 = vand.u32 %v303, 4294901760
        %510 = vmatmul.f32.gmra.mxu0 %v509
        %v511 = vpop.f32.mrf.mxu0
        %v512 = vadd.f32 %v399, %v511
        %513 = vdwg.mxu0
        %v514 = vand.u32 %v335, 4294901760
        %v515 = vsub.f32 %v335, %v514
        %516 = vmatpush.msra.mxu0 %v515
        %v517 = vand.u32 %v334, 4294901760
        %v518 = vsub.f32 %v334, %v517
        %519 = vmatpush.msra.mxu0 %v518
        %v520 = vand.u32 %v333, 4294901760
        %v521 = vsub.f32 %v333, %v520
        %522 = vmatpush.msra.mxu0 %v521
        %v523 = vand.u32 %v332, 4294901760
        %v524 = vsub.f32 %v332, %v523
        %525 = vmatpush.msra.mxu0 %v524
        %v526 = vand.u32 %v331, 4294901760
        %v527 = vsub.f32 %v331, %v526
        %528 = vmatpush.msra.mxu0 %v527
        %v529 = vand.u32 %v330, 4294901760
        %v530 = vsub.f32 %v330, %v529
        %531 = vmatpush.msra.mxu0 %v530
        %v532 = vand.u32 %v329, 4294901760
        %v533 = vsub.f32 %v329, %v532
        %534 = vmatpush.msra.mxu0 %v533
        %v535 = vand.u32 %v328, 4294901760
        %v536 = vsub.f32 %v328, %v535
        %537 = vmatpush.msra.mxu0 %v536
        %v538 = vand.u32 %v327, 4294901760
        %v539 = vsub.f32 %v327, %v538
        %540 = vmatpush.msra.mxu0 %v539
        %v541 = vand.u32 %v326, 4294901760
        %v542 = vsub.f32 %v326, %v541
        %543 = vmatpush.msra.mxu0 %v542
        %v544 = vand.u32 %v325, 4294901760
        %v545 = vsub.f32 %v325, %v544
        %546 = vmatpush.msra.mxu0 %v545
        %v547 = vand.u32 %v324, 4294901760
        %v548 = vsub.f32 %v324, %v547
        %549 = vmatpush.msra.mxu0 %v548
        %v550 = vand.u32 %v323, 4294901760
        %v551 = vsub.f32 %v323, %v550
        %552 = vmatpush.msra.mxu0 %v551
        %v553 = vand.u32 %v322, 4294901760
        %v554 = vsub.f32 %v322, %v553
        %555 = vmatpush.msra.mxu0 %v554
        %v556 = vand.u32 %v321, 4294901760
        %v557 = vsub.f32 %v321, %v556
        %558 = vmatpush.msra.mxu0 %v557
        %v559 = vand.u32 %v320, 4294901760
        %v560 = vsub.f32 %v320, %v559
        %561 = vmatpush.msra.mxu0 %v560
        %v562 = vand.u32 %v300, 4294901760
        %v563 = vsub.f32 %v300, %v562
        %564 = vmatmul.f32.gmra.mxu0 %v563
        %v565 = vpop.f32.mrf.mxu0
        %v566 = vadd.f32 %v500, %v565
        %v567 = vand.u32 %v301, 4294901760
        %v568 = vsub.f32 %v301, %v567
        %569 = vmatmul.f32.gmra.mxu0 %v568
        %v570 = vpop.f32.mrf.mxu0
        %v571 = vadd.f32 %v504, %v570
        %v572 = vand.u32 %v302, 4294901760
        %v573 = vsub.f32 %v302, %v572
        %574 = vmatmul.f32.gmra.mxu0 %v573
        %v575 = vpop.f32.mrf.mxu0
        %v576 = vadd.f32 %v508, %v575
        %v577 = vand.u32 %v303, 4294901760
        %v578 = vsub.f32 %v303, %v577
        %579 = vmatmul.f32.gmra.mxu0 %v578
        %v580 = vpop.f32.mrf.mxu0
        %v581 = vadd.f32 %v512, %v580
        %582 = vdwg.mxu0
        %v583 = vand.u32 %v335, 4294901760
        %584 = vmatpush.msra.mxu0 %v583
        %v585 = vand.u32 %v334, 4294901760
        %586 = vmatpush.msra.mxu0 %v585
        %v587 = vand.u32 %v333, 4294901760
        %588 = vmatpush.msra.mxu0 %v587
        %v589 = vand.u32 %v332, 4294901760
        %590 = vmatpush.msra.mxu0 %v589
        %v591 = vand.u32 %v331, 4294901760
        %592 = vmatpush.msra.mxu0 %v591
        %v593 = vand.u32 %v330, 4294901760
        %594 = vmatpush.msra.mxu0 %v593
        %v595 = vand.u32 %v329, 4294901760
        %596 = vmatpush.msra.mxu0 %v595
        %v597 = vand.u32 %v328, 4294901760
        %598 = vmatpush.msra.mxu0 %v597
        %v599 = vand.u32 %v327, 4294901760
        %600 = vmatpush.msra.mxu0 %v599
        %v601 = vand.u32 %v326, 4294901760
        %602 = vmatpush.msra.mxu0 %v601
        %v603 = vand.u32 %v325, 4294901760
        %604 = vmatpush.msra.mxu0 %v603
        %v605 = vand.u32 %v324, 4294901760
        %606 = vmatpush.msra.mxu0 %v605
        %v607 = vand.u32 %v323, 4294901760
        %608 = vmatpush.msra.mxu0 %v607
        %v609 = vand.u32 %v322, 4294901760
        %610 = vmatpush.msra.mxu0 %v609
        %v611 = vand.u32 %v321, 4294901760
        %612 = vmatpush.msra.mxu0 %v611
        %v613 = vand.u32 %v320, 4294901760
        %614 = vmatpush.msra.mxu0 %v613
        %v615 = vand.u32 %v300, 4294901760
        %v616 = vsub.f32 %v300, %v615
        %v617 = vand.u32 %v616, 4294901760
        %618 = vmatmul.f32.gmra.mxu0 %v617
        %v619 = vpop.f32.mrf.mxu0
        %v620 = vadd.f32 %v566, %v619
        %v621 = vand.u32 %v301, 4294901760
        %v622 = vsub.f32 %v301, %v621
        %v623 = vand.u32 %v622, 4294901760
        %624 = vmatmul.f32.gmra.mxu0 %v623
        %v625 = vpop.f32.mrf.mxu0
        %v626 = vadd.f32 %v571, %v625
        %v627 = vand.u32 %v302, 4294901760
        %v628 = vsub.f32 %v302, %v627
        %v629 = vand.u32 %v628, 4294901760
        %630 = vmatmul.f32.gmra.mxu0 %v629
        %v631 = vpop.f32.mrf.mxu0
        %v632 = vadd.f32 %v576, %v631
        %v633 = vand.u32 %v303, 4294901760
        %v634 = vsub.f32 %v303, %v633
        %v635 = vand.u32 %v634, 4294901760
        %636 = vmatmul.f32.gmra.mxu0 %v635
        %v637 = vpop.f32.mrf.mxu0
        %v638 = vadd.f32 %v581, %v637
        %639 = vdwg.mxu0
        %v640 = vand.u32 %v335, 4294901760
        %v641 = vsub.f32 %v335, %v640
        %v642 = vand.u32 %v641, 4294901760
        %643 = vmatpush.msra.mxu0 %v642
        %v644 = vand.u32 %v334, 4294901760
        %v645 = vsub.f32 %v334, %v644
        %v646 = vand.u32 %v645, 4294901760
        %647 = vmatpush.msra.mxu0 %v646
        %v648 = vand.u32 %v333, 4294901760
        %v649 = vsub.f32 %v333, %v648
        %v650 = vand.u32 %v649, 4294901760
        %651 = vmatpush.msra.mxu0 %v650
        %v652 = vand.u32 %v332, 4294901760
        %v653 = vsub.f32 %v332, %v652
        %v654 = vand.u32 %v653, 4294901760
        %655 = vmatpush.msra.mxu0 %v654
        %v656 = vand.u32 %v331, 4294901760
        %v657 = vsub.f32 %v331, %v656
        %v658 = vand.u32 %v657, 4294901760
        %659 = vmatpush.msra.mxu0 %v658
        %v660 = vand.u32 %v330, 4294901760
        %v661 = vsub.f32 %v330, %v660
        %v662 = vand.u32 %v661, 4294901760
        %663 = vmatpush.msra.mxu0 %v662
        %v664 = vand.u32 %v329, 4294901760
        %v665 = vsub.f32 %v329, %v664
        %v666 = vand.u32 %v665, 4294901760
        %667 = vmatpush.msra.mxu0 %v666
        %v668 = vand.u32 %v328, 4294901760
        %v669 = vsub.f32 %v328, %v668
        %v670 = vand.u32 %v669, 4294901760
        %671 = vmatpush.msra.mxu0 %v670
        %v672 = vand.u32 %v327, 4294901760
        %v673 = vsub.f32 %v327, %v672
        %v674 = vand.u32 %v673, 4294901760
        %675 = vmatpush.msra.mxu0 %v674
        %v676 = vand.u32 %v326, 4294901760
        %v677 = vsub.f32 %v326, %v676
        %v678 = vand.u32 %v677, 4294901760
        %679 = vmatpush.msra.mxu0 %v678
        %v680 = vand.u32 %v325, 4294901760
        %v681 = vsub.f32 %v325, %v680
        %v682 = vand.u32 %v681, 4294901760
        %683 = vmatpush.msra.mxu0 %v682
        %v684 = vand.u32 %v324, 4294901760
        %v685 = vsub.f32 %v324, %v684
        %v686 = vand.u32 %v685, 4294901760
        %687 = vmatpush.msra.mxu0 %v686
        %v688 = vand.u32 %v323, 4294901760
        %v689 = vsub.f32 %v323, %v688
        %v690 = vand.u32 %v689, 4294901760
        %691 = vmatpush.msra.mxu0 %v690
        %v692 = vand.u32 %v322, 4294901760
        %v693 = vsub.f32 %v322, %v692
        %v694 = vand.u32 %v693, 4294901760
        %695 = vmatpush.msra.mxu0 %v694
        %v696 = vand.u32 %v321, 4294901760
        %v697 = vsub.f32 %v321, %v696
        %v698 = vand.u32 %v697, 4294901760
        %699 = vmatpush.msra.mxu0 %v698
        %v700 = vand.u32 %v320, 4294901760
        %v701 = vsub.f32 %v320, %v700
        %v702 = vand.u32 %v701, 4294901760
        %703 = vmatpush.msra.mxu0 %v702
        %v704 = vand.u32 %v300, 4294901760
        %705 = vmatmul.f32.gmra.mxu0 %v704
        %v706 = vpop.f32.mrf.mxu0
        %v707 = vadd.f32 %v620, %v706
        %v708 = vand.u32 %v301, 4294901760
        %709 = vmatmul.f32.gmra.mxu0 %v708
        %v710 = vpop.f32.mrf.mxu0
        %v711 = vadd.f32 %v626, %v710
        %v712 = vand.u32 %v302, 4294901760
        %713 = vmatmul.f32.gmra.mxu0 %v712
        %v714 = vpop.f32.mrf.mxu0
        %v715 = vadd.f32 %v632, %v714
        %v716 = vand.u32 %v303, 4294901760
        %717 = vmatmul.f32.gmra.mxu0 %v716
        %v718 = vpop.f32.mrf.mxu0
        %v719 = vadd.f32 %v638, %v718
        %720 = vdwg.mxu0
        %v721 = vand.u32 %v335, 4294901760
        %722 = vmatpush.msra.mxu0 %v721
        %v723 = vand.u32 %v334, 4294901760
        %724 = vmatpush.msra.mxu0 %v723
        %v725 = vand.u32 %v333, 4294901760
        %726 = vmatpush.msra.mxu0 %v725
        %v727 = vand.u32 %v332, 4294901760
        %728 = vmatpush.msra.mxu0 %v727
        %v729 = vand.u32 %v331, 4294901760
        %730 = vmatpush.msra.mxu0 %v729
        %v731 = vand.u32 %v330, 4294901760
        %732 = vmatpush.msra.mxu0 %v731
        %v733 = vand.u32 %v329, 4294901760
        %734 = vmatpush.msra.mxu0 %v733
        %v735 = vand.u32 %v328, 4294901760
        %736 = vmatpush.msra.mxu0 %v735
        %v737 = vand.u32 %v327, 4294901760
        %738 = vmatpush.msra.mxu0 %v737
        %v739 = vand.u32 %v326, 4294901760
        %740 = vmatpush.msra.mxu0 %v739
        %v741 = vand.u32 %v325, 4294901760
        %742 = vmatpush.msra.mxu0 %v741
        %v743 = vand.u32 %v324, 4294901760
        %744 = vmatpush.msra.mxu0 %v743
        %v745 = vand.u32 %v323, 4294901760
        %746 = vmatpush.msra.mxu0 %v745
        %v747 = vand.u32 %v322, 4294901760
        %748 = vmatpush.msra.mxu0 %v747
        %v749 = vand.u32 %v321, 4294901760
        %750 = vmatpush.msra.mxu0 %v749
        %v751 = vand.u32 %v320, 4294901760
        %752 = vmatpush.msra.mxu0 %v751
        %v753 = vand.u32 %v300, 4294901760
        %754 = vmatmul.f32.gmra.mxu0 %v753
        %v755 = vpop.f32.mrf.mxu0
        %v756 = vadd.f32 %v707, %v755
        %v757 = vand.u32 %v301, 4294901760
        %758 = vmatmul.f32.gmra.mxu0 %v757
        %v759 = vpop.f32.mrf.mxu0
        %v760 = vadd.f32 %v711, %v759
        %v761 = vand.u32 %v302, 4294901760
        %762 = vmatmul.f32.gmra.mxu0 %v761
        %v763 = vpop.f32.mrf.mxu0
        %v764 = vadd.f32 %v715, %v763
        %v765 = vand.u32 %v303, 4294901760
        %766 = vmatmul.f32.gmra.mxu0 %v765
        %v767 = vpop.f32.mrf.mxu0
        %v768 = vadd.f32 %v719, %v767
        %769 = vdwg.mxu0
        %v770 = vand.u32 %v319, 4294901760
        %771 = vmatpush.msra.mxu0 %v770
        %v772 = vand.u32 %v318, 4294901760
        %773 = vmatpush.msra.mxu0 %v772
        %v774 = vand.u32 %v317, 4294901760
        %775 = vmatpush.msra.mxu0 %v774
        %v776 = vand.u32 %v316, 4294901760
        %777 = vmatpush.msra.mxu0 %v776
        %v778 = vand.u32 %v315, 4294901760
        %779 = vmatpush.msra.mxu0 %v778
        %v780 = vand.u32 %v314, 4294901760
        %781 = vmatpush.msra.mxu0 %v780
        %v782 = vand.u32 %v313, 4294901760
        %783 = vmatpush.msra.mxu0 %v782
        %v784 = vand.u32 %v312, 4294901760
        %785 = vmatpush.msra.mxu0 %v784
        %v786 = vand.u32 %v311, 4294901760
        %787 = vmatpush.msra.mxu0 %v786
        %v788 = vand.u32 %v310, 4294901760
        %789 = vmatpush.msra.mxu0 %v788
        %v790 = vand.u32 %v309, 4294901760
        %791 = vmatpush.msra.mxu0 %v790
        %v792 = vand.u32 %v308, 4294901760
        %793 = vmatpush.msra.mxu0 %v792
        %v794 = vand.u32 %v307, 4294901760
        %795 = vmatpush.msra.mxu0 %v794
        %v796 = vand.u32 %v306, 4294901760
        %797 = vmatpush.msra.mxu0 %v796
        %v798 = vand.u32 %v305, 4294901760
        %799 = vmatpush.msra.mxu0 %v798
        %v800 = vand.u32 %v304, 4294901760
        %801 = vmatpush.msra.mxu0 %v800
        %v802 = vand.u32 %v296, 4294901760
        %v803 = vsub.f32 %v296, %v802
        %v804 = vand.u32 %v803, 4294901760
        %v805 = vsub.f32 %v803, %v804
        %v806 = vand.u32 %v805, 4294901760
        %807 = vmatmul.f32.gmra.mxu0 %v806
        %v808 = vpop.f32.mrf.mxu0
        %v809 = vadd.f32 %v756, %v808
        %v810 = vand.u32 %v297, 4294901760
        %v811 = vsub.f32 %v297, %v810
        %v812 = vand.u32 %v811, 4294901760
        %v813 = vsub.f32 %v811, %v812
        %v814 = vand.u32 %v813, 4294901760
        %815 = vmatmul.f32.gmra.mxu0 %v814
        %v816 = vpop.f32.mrf.mxu0
        %v817 = vadd.f32 %v760, %v816
        %v818 = vand.u32 %v298, 4294901760
        %v819 = vsub.f32 %v298, %v818
        %v820 = vand.u32 %v819, 4294901760
        %v821 = vsub.f32 %v819, %v820
        %v822 = vand.u32 %v821, 4294901760
        %823 = vmatmul.f32.gmra.mxu0 %v822
        %v824 = vpop.f32.mrf.mxu0
        %v825 = vadd.f32 %v764, %v824
        %v826 = vand.u32 %v299, 4294901760
        %v827 = vsub.f32 %v299, %v826
        %v828 = vand.u32 %v827, 4294901760
        %v829 = vsub.f32 %v827, %v828
        %v830 = vand.u32 %v829, 4294901760
        %831 = vmatmul.f32.gmra.mxu0 %v830
        %v832 = vpop.f32.mrf.mxu0
        %v833 = vadd.f32 %v768, %v832
        %834 = vdwg.mxu0
        %v835 = vand.u32 %v319, 4294901760
        %v836 = vsub.f32 %v319, %v835
        %v837 = vand.u32 %v836, 4294901760
        %v838 = vsub.f32 %v836, %v837
        %v839 = vand.u32 %v838, 4294901760
        %840 = vmatpush.msra.mxu0 %v839
        %v841 = vand.u32 %v318, 4294901760
        %v842 = vsub.f32 %v318, %v841
        %v843 = vand.u32 %v842, 4294901760
        %v844 = vsub.f32 %v842, %v843
        %v845 = vand.u32 %v844, 4294901760
        %846 = vmatpush.msra.mxu0 %v845
        %v847 = vand.u32 %v317, 4294901760
        %v848 = vsub.f32 %v317, %v847
        %v849 = vand.u32 %v848, 4294901760
        %v850 = vsub.f32 %v848, %v849
        %v851 = vand.u32 %v850, 4294901760
        %852 = vmatpush.msra.mxu0 %v851
        %v853 = vand.u32 %v316, 4294901760
        %v854 = vsub.f32 %v316, %v853
        %v855 = vand.u32 %v854, 4294901760
        %v856 = vsub.f32 %v854, %v855
        %v857 = vand.u32 %v856, 4294901760
        %858 = vmatpush.msra.mxu0 %v857
        %v859 = vand.u32 %v315, 4294901760
        %v860 = vsub.f32 %v315, %v859
        %v861 = vand.u32 %v860, 4294901760
        %v862 = vsub.f32 %v860, %v861
        %v863 = vand.u32 %v862, 4294901760
        %864 = vmatpush.msra.mxu0 %v863
        %v865 = vand.u32 %v314, 4294901760
        %v866 = vsub.f32 %v314, %v865
        %v867 = vand.u32 %v866, 4294901760
        %v868 = vsub.f32 %v866, %v867
        %v869 = vand.u32 %v868, 4294901760
        %870 = vmatpush.msra.mxu0 %v869
        %v871 = vand.u32 %v313, 4294901760
        %v872 = vsub.f32 %v313, %v871
        %v873 = vand.u32 %v872, 4294901760
        %v874 = vsub.f32 %v872, %v873
        %v875 = vand.u32 %v874, 4294901760
        %876 = vmatpush.msra.mxu0 %v875
        %v877 = vand.u32 %v312, 4294901760
        %v878 = vsub.f32 %v312, %v877
        %v879 = vand.u32 %v878, 4294901760
        %v880 = vsub.f32 %v878, %v879
        %v881 = vand.u32 %v880, 4294901760
        %882 = vmatpush.msra.mxu0 %v881
        %v883 = vand.u32 %v311, 4294901760
        %v884 = vsub.f32 %v311, %v883
        %v885 = vand.u32 %v884, 4294901760
        %v886 = vsub.f32 %v884, %v885
        %v887 = vand.u32 %v886, 4294901760
        %888 = vmatpush.msra.mxu0 %v887
        %v889 = vand.u32 %v310, 4294901760
        %v890 = vsub.f32 %v310, %v889
        %v891 = vand.u32 %v890, 4294901760
        %v892 = vsub.f32 %v890, %v891
        %v893 = vand.u32 %v892, 4294901760
        %894 = vmatpush.msra.mxu0 %v893
        %v895 = vand.u32 %v309, 4294901760
        %v896 = vsub.f32 %v309, %v895
        %v897 = vand.u32 %v896, 4294901760
        %v898 = vsub.f32 %v896, %v897
        %v899 = vand.u32 %v898, 4294901760
        %900 = vmatpush.msra.mxu0 %v899
        %v901 = vand.u32 %v308, 4294901760
        %v902 = vsub.f32 %v308, %v901
        %v903 = vand.u32 %v902, 4294901760
        %v904 = vsub.f32 %v902, %v903
        %v905 = vand.u32 %v904, 4294901760
        %906 = vmatpush.msra.mxu0 %v905
        %v907 = vand.u32 %v307, 4294901760
        %v908 = vsub.f32 %v307, %v907
        %v909 = vand.u32 %v908, 4294901760
        %v910 = vsub.f32 %v908, %v909
        %v911 = vand.u32 %v910, 4294901760
        %912 = vmatpush.msra.mxu0 %v911
        %v913 = vand.u32 %v306, 4294901760
        %v914 = vsub.f32 %v306, %v913
        %v915 = vand.u32 %v914, 4294901760
        %v916 = vsub.f32 %v914, %v915
        %v917 = vand.u32 %v916, 4294901760
        %918 = vmatpush.msra.mxu0 %v917
        %v919 = vand.u32 %v305, 4294901760
        %v920 = vsub.f32 %v305, %v919
        %v921 = vand.u32 %v920, 4294901760
        %v922 = vsub.f32 %v920, %v921
        %v923 = vand.u32 %v922, 4294901760
        %924 = vmatpush.msra.mxu0 %v923
        %v925 = vand.u32 %v304, 4294901760
        %v926 = vsub.f32 %v304, %v925
        %v927 = vand.u32 %v926, 4294901760
        %v928 = vsub.f32 %v926, %v927
        %v929 = vand.u32 %v928, 4294901760
        %930 = vmatpush.msra.mxu0 %v929
        %v931 = vand.u32 %v296, 4294901760
        %932 = vmatmul.f32.gmra.mxu0 %v931
        %v933 = vpop.f32.mrf.mxu0
        %v934 = vadd.f32 %v809, %v933
        %v935 = vand.u32 %v297, 4294901760
        %936 = vmatmul.f32.gmra.mxu0 %v935
        %v937 = vpop.f32.mrf.mxu0
        %v938 = vadd.f32 %v817, %v937
        %v939 = vand.u32 %v298, 4294901760
        %940 = vmatmul.f32.gmra.mxu0 %v939
        %v941 = vpop.f32.mrf.mxu0
        %v942 = vadd.f32 %v825, %v941
        %v943 = vand.u32 %v299, 4294901760
        %944 = vmatmul.f32.gmra.mxu0 %v943
        %v945 = vpop.f32.mrf.mxu0
        %v946 = vadd.f32 %v833, %v945
        %947 = vdwg.mxu0
        %v948 = vand.u32 %v319, 4294901760
        %v949 = vsub.f32 %v319, %v948
        %950 = vmatpush.msra.mxu0 %v949
        %v951 = vand.u32 %v318, 4294901760
        %v952 = vsub.f32 %v318, %v951
        %953 = vmatpush.msra.mxu0 %v952
        %v954 = vand.u32 %v317, 4294901760
        %v955 = vsub.f32 %v317, %v954
        %956 = vmatpush.msra.mxu0 %v955
        %v957 = vand.u32 %v316, 4294901760
        %v958 = vsub.f32 %v316, %v957
        %959 = vmatpush.msra.mxu0 %v958
        %v960 = vand.u32 %v315, 4294901760
        %v961 = vsub.f32 %v315, %v960
        %962 = vmatpush.msra.mxu0 %v961
        %v963 = vand.u32 %v314, 4294901760
        %v964 = vsub.f32 %v314, %v963
        %965 = vmatpush.msra.mxu0 %v964
        %v966 = vand.u32 %v313, 4294901760
        %v967 = vsub.f32 %v313, %v966
        %968 = vmatpush.msra.mxu0 %v967
        %v969 = vand.u32 %v312, 4294901760
        %v970 = vsub.f32 %v312, %v969
        %971 = vmatpush.msra.mxu0 %v970
        %v972 = vand.u32 %v311, 4294901760
        %v973 = vsub.f32 %v311, %v972
        %974 = vmatpush.msra.mxu0 %v973
        %v975 = vand.u32 %v310, 4294901760
        %v976 = vsub.f32 %v310, %v975
        %977 = vmatpush.msra.mxu0 %v976
        %v978 = vand.u32 %v309, 4294901760
        %v979 = vsub.f32 %v309, %v978
        %980 = vmatpush.msra.mxu0 %v979
        %v981 = vand.u32 %v308, 4294901760
        %v982 = vsub.f32 %v308, %v981
        %983 = vmatpush.msra.mxu0 %v982
        %v984 = vand.u32 %v307, 4294901760
        %v985 = vsub.f32 %v307, %v984
        %986 = vmatpush.msra.mxu0 %v985
        %v987 = vand.u32 %v306, 4294901760
        %v988 = vsub.f32 %v306, %v987
        %989 = vmatpush.msra.mxu0 %v988
        %v990 = vand.u32 %v305, 4294901760
        %v991 = vsub.f32 %v305, %v990
        %992 = vmatpush.msra.mxu0 %v991
        %v993 = vand.u32 %v304, 4294901760
        %v994 = vsub.f32 %v304, %v993
        %995 = vmatpush.msra.mxu0 %v994
        %v996 = vand.u32 %v296, 4294901760
        %v997 = vsub.f32 %v296, %v996
        %998 = vmatmul.f32.gmra.mxu0 %v997
        %v999 = vpop.f32.mrf.mxu0
        %v1000 = vadd.f32 %v934, %v999
        %v1001 = vand.u32 %v297, 4294901760
        %v1002 = vsub.f32 %v297, %v1001
        %1003 = vmatmul.f32.gmra.mxu0 %v1002
        %v1004 = vpop.f32.mrf.mxu0
        %v1005 = vadd.f32 %v938, %v1004
        %v1006 = vand.u32 %v298, 4294901760
        %v1007 = vsub.f32 %v298, %v1006
        %1008 = vmatmul.f32.gmra.mxu0 %v1007
        %v1009 = vpop.f32.mrf.mxu0
        %v1010 = vadd.f32 %v942, %v1009
        %v1011 = vand.u32 %v299, 4294901760
        %v1012 = vsub.f32 %v299, %v1011
        %1013 = vmatmul.f32.gmra.mxu0 %v1012
        %v1014 = vpop.f32.mrf.mxu0
        %v1015 = vadd.f32 %v946, %v1014
        %1016 = vdwg.mxu0
        %v1017 = vand.u32 %v319, 4294901760
        %1018 = vmatpush.msra.mxu0 %v1017
        %v1019 = vand.u32 %v318, 4294901760
        %1020 = vmatpush.msra.mxu0 %v1019
        %v1021 = vand.u32 %v317, 4294901760
        %1022 = vmatpush.msra.mxu0 %v1021
        %v1023 = vand.u32 %v316, 4294901760
        %1024 = vmatpush.msra.mxu0 %v1023
        %v1025 = vand.u32 %v315, 4294901760
        %1026 = vmatpush.msra.mxu0 %v1025
        %v1027 = vand.u32 %v314, 4294901760
        %1028 = vmatpush.msra.mxu0 %v1027
        %v1029 = vand.u32 %v313, 4294901760
        %1030 = vmatpush.msra.mxu0 %v1029
        %v1031 = vand.u32 %v312, 4294901760
        %1032 = vmatpush.msra.mxu0 %v1031
        %v1033 = vand.u32 %v311, 4294901760
        %1034 = vmatpush.msra.mxu0 %v1033
        %v1035 = vand.u32 %v310, 4294901760
        %1036 = vmatpush.msra.mxu0 %v1035
        %v1037 = vand.u32 %v309, 4294901760
        %1038 = vmatpush.msra.mxu0 %v1037
        %v1039 = vand.u32 %v308, 4294901760
        %1040 = vmatpush.msra.mxu0 %v1039
        %v1041 = vand.u32 %v307, 4294901760
        %1042 = vmatpush.msra.mxu0 %v1041
        %v1043 = vand.u32 %v306, 4294901760
        %1044 = vmatpush.msra.mxu0 %v1043
        %v1045 = vand.u32 %v305, 4294901760
        %1046 = vmatpush.msra.mxu0 %v1045
        %v1047 = vand.u32 %v304, 4294901760
        %1048 = vmatpush.msra.mxu0 %v1047
        %v1049 = vand.u32 %v296, 4294901760
        %v1050 = vsub.f32 %v296, %v1049
        %v1051 = vand.u32 %v1050, 4294901760
        %1052 = vmatmul.f32.gmra.mxu0 %v1051
        %v1053 = vpop.f32.mrf.mxu0
        %v1054 = vadd.f32 %v1000, %v1053
        %v1055 = vand.u32 %v297, 4294901760
        %v1056 = vsub.f32 %v297, %v1055
        %v1057 = vand.u32 %v1056, 4294901760
        %1058 = vmatmul.f32.gmra.mxu0 %v1057
        %v1059 = vpop.f32.mrf.mxu0
        %v1060 = vadd.f32 %v1005, %v1059
        %v1061 = vand.u32 %v298, 4294901760
        %v1062 = vsub.f32 %v298, %v1061
        %v1063 = vand.u32 %v1062, 4294901760
        %1064 = vmatmul.f32.gmra.mxu0 %v1063
        %v1065 = vpop.f32.mrf.mxu0
        %v1066 = vadd.f32 %v1010, %v1065
        %v1067 = vand.u32 %v299, 4294901760
        %v1068 = vsub.f32 %v299, %v1067
        %v1069 = vand.u32 %v1068, 4294901760
        %1070 = vmatmul.f32.gmra.mxu0 %v1069
        %v1071 = vpop.f32.mrf.mxu0
        %v1072 = vadd.f32 %v1015, %v1071
        %1073 = vdwg.mxu0
        %v1074 = vand.u32 %v319, 4294901760
        %v1075 = vsub.f32 %v319, %v1074
        %v1076 = vand.u32 %v1075, 4294901760
        %1077 = vmatpush.msra.mxu0 %v1076
        %v1078 = vand.u32 %v318, 4294901760
        %v1079 = vsub.f32 %v318, %v1078
        %v1080 = vand.u32 %v1079, 4294901760
        %1081 = vmatpush.msra.mxu0 %v1080
        %v1082 = vand.u32 %v317, 4294901760
        %v1083 = vsub.f32 %v317, %v1082
        %v1084 = vand.u32 %v1083, 4294901760
        %1085 = vmatpush.msra.mxu0 %v1084
        %v1086 = vand.u32 %v316, 4294901760
        %v1087 = vsub.f32 %v316, %v1086
        %v1088 = vand.u32 %v1087, 4294901760
        %1089 = vmatpush.msra.mxu0 %v1088
        %v1090 = vand.u32 %v315, 4294901760
        %v1091 = vsub.f32 %v315, %v1090
        %v1092 = vand.u32 %v1091, 4294901760
        %1093 = vmatpush.msra.mxu0 %v1092
        %v1094 = vand.u32 %v314, 4294901760
        %v1095 = vsub.f32 %v314, %v1094
        %v1096 = vand.u32 %v1095, 4294901760
        %1097 = vmatpush.msra.mxu0 %v1096
        %v1098 = vand.u32 %v313, 4294901760
        %v1099 = vsub.f32 %v313, %v1098
        %v1100 = vand.u32 %v1099, 4294901760
        %1101 = vmatpush.msra.mxu0 %v1100
        %v1102 = vand.u32 %v312, 4294901760
        %v1103 = vsub.f32 %v312, %v1102
        %v1104 = vand.u32 %v1103, 4294901760
        %1105 = vmatpush.msra.mxu0 %v1104
        %v1106 = vand.u32 %v311, 4294901760
        %v1107 = vsub.f32 %v311, %v1106
        %v1108 = vand.u32 %v1107, 4294901760
        %1109 = vmatpush.msra.mxu0 %v1108
        %v1110 = vand.u32 %v310, 4294901760
        %v1111 = vsub.f32 %v310, %v1110
        %v1112 = vand.u32 %v1111, 4294901760
        %1113 = vmatpush.msra.mxu0 %v1112
        %v1114 = vand.u32 %v309, 4294901760
        %v1115 = vsub.f32 %v309, %v1114
        %v1116 = vand.u32 %v1115, 4294901760
        %1117 = vmatpush.msra.mxu0 %v1116
        %v1118 = vand.u32 %v308, 4294901760
        %v1119 = vsub.f32 %v308, %v1118
        %v1120 = vand.u32 %v1119, 4294901760
        %1121 = vmatpush.msra.mxu0 %v1120
        %v1122 = vand.u32 %v307, 4294901760
        %v1123 = vsub.f32 %v307, %v1122
        %v1124 = vand.u32 %v1123, 4294901760
        %1125 = vmatpush.msra.mxu0 %v1124
        %v1126 = vand.u32 %v306, 4294901760
        %v1127 = vsub.f32 %v306, %v1126
        %v1128 = vand.u32 %v1127, 4294901760
        %1129 = vmatpush.msra.mxu0 %v1128
        %v1130 = vand.u32 %v305, 4294901760
        %v1131 = vsub.f32 %v305, %v1130
        %v1132 = vand.u32 %v1131, 4294901760
        %1133 = vmatpush.msra.mxu0 %v1132
        %v1134 = vand.u32 %v304, 4294901760
        %v1135 = vsub.f32 %v304, %v1134
        %v1136 = vand.u32 %v1135, 4294901760
        %1137 = vmatpush.msra.mxu0 %v1136
        %v1138 = vand.u32 %v296, 4294901760
        %1139 = vmatmul.f32.gmra.mxu0 %v1138
        %v1140 = vpop.f32.mrf.mxu0
        %v1141 = vadd.f32 %v1054, %v1140
        %v1142 = vand.u32 %v297, 4294901760
        %1143 = vmatmul.f32.gmra.mxu0 %v1142
        %v1144 = vpop.f32.mrf.mxu0
        %v1145 = vadd.f32 %v1060, %v1144
        %v1146 = vand.u32 %v298, 4294901760
        %1147 = vmatmul.f32.gmra.mxu0 %v1146
        %v1148 = vpop.f32.mrf.mxu0
        %v1149 = vadd.f32 %v1066, %v1148
        %v1150 = vand.u32 %v299, 4294901760
        %1151 = vmatmul.f32.gmra.mxu0 %v1150
        %v1152 = vpop.f32.mrf.mxu0
        %v1153 = vadd.f32 %v1072, %v1152
        %1154 = vdwg.mxu0
        %v1155 = vand.u32 %v319, 4294901760
        %1156 = vmatpush.msra.mxu0 %v1155
        %v1157 = vand.u32 %v318, 4294901760
        %1158 = vmatpush.msra.mxu0 %v1157
        %v1159 = vand.u32 %v317, 4294901760
        %1160 = vmatpush.msra.mxu0 %v1159
        %v1161 = vand.u32 %v316, 4294901760
        %1162 = vmatpush.msra.mxu0 %v1161
        %v1163 = vand.u32 %v315, 4294901760
        %1164 = vmatpush.msra.mxu0 %v1163
        %v1165 = vand.u32 %v314, 4294901760
        %1166 = vmatpush.msra.mxu0 %v1165
        %v1167 = vand.u32 %v313, 4294901760
        %1168 = vmatpush.msra.mxu0 %v1167
        %v1169 = vand.u32 %v312, 4294901760
        %1170 = vmatpush.msra.mxu0 %v1169
        %v1171 = vand.u32 %v311, 4294901760
        %1172 = vmatpush.msra.mxu0 %v1171
        %v1173 = vand.u32 %v310, 4294901760
        %1174 = vmatpush.msra.mxu0 %v1173
        %v1175 = vand.u32 %v309, 4294901760
        %1176 = vmatpush.msra.mxu0 %v1175
        %v1177 = vand.u32 %v308, 4294901760
        %1178 = vmatpush.msra.mxu0 %v1177
        %v1179 = vand.u32 %v307, 4294901760
        %1180 = vmatpush.msra.mxu0 %v1179
        %v1181 = vand.u32 %v306, 4294901760
        %1182 = vmatpush.msra.mxu0 %v1181
        %v1183 = vand.u32 %v305, 4294901760
        %1184 = vmatpush.msra.mxu0 %v1183
        %v1185 = vand.u32 %v304, 4294901760
        %1186 = vmatpush.msra.mxu0 %v1185
        %v1187 = vand.u32 %v296, 4294901760
        %1188 = vmatmul.f32.gmra.mxu0 %v1187
        %v1189 = vpop.f32.mrf.mxu0
        %v1190 = vadd.f32 %v1141, %v1189
        %v1191 = vand.u32 %v297, 4294901760
        %1192 = vmatmul.f32.gmra.mxu0 %v1191
        %v1193 = vpop.f32.mrf.mxu0
        %v1194 = vadd.f32 %v1145, %v1193
        %v1195 = vand.u32 %v298, 4294901760
        %1196 = vmatmul.f32.gmra.mxu0 %v1195
        %v1197 = vpop.f32.mrf.mxu0
        %v1198 = vadd.f32 %v1149, %v1197
        %v1199 = vand.u32 %v299, 4294901760
        %1200 = vmatmul.f32.gmra.mxu0 %v1199
        %v1201 = vpop.f32.mrf.mxu0
        %v1202 = vadd.f32 %v1153, %v1201
        %1203 = vdwg.mxu0
        %v1204 = vmul.f32 %v1190, 0.5
        %v1205 = vmul.f32 %v1194, 0.5
        %v1206 = vmul.f32 %v1198, 0.5
        %v1207 = vmul.f32 %v1202, 0.5
        %v1208 = vtanh.pop %v1204
        %v1209 = vtanh.pop %v1205
        %v1210 = vtanh.pop %v1206
        %v1211 = vtanh.pop %v1207
        %v1212 = vmul.f32 %v1208, 0.5
        %v1213 = vmul.f32 %v1209, 0.5
        %v1214 = vmul.f32 %v1210, 0.5
        %v1215 = vmul.f32 %v1211, 0.5
        %v1216 = vadd.f32 %v1212, 0.5
        %v1217 = vadd.f32 %v1213, 0.5
        %v1218 = vadd.f32 %v1214, 0.5
        %v1219 = vadd.f32 %v1215, 0.5
        %v1220 = vsub.f32 %v296, %v300
        %v1221 = vsub.f32 %v297, %v301
        %v1222 = vsub.f32 %v298, %v302
        %v1223 = vsub.f32 %v299, %v303
        %v1224 = vmul.f32 %v1216, %v1220
        %v1225 = vmul.f32 %v1217, %v1221
        %v1226 = vmul.f32 %v1218, %v1222
        %v1227 = vmul.f32 %v1219, %v1223
        %v1228 = vadd.f32 %v300, %v1224
        %v1229 = vadd.f32 %v301, %v1225
        %v1230 = vadd.f32 %v302, %v1226
        %v1231 = vadd.f32 %v303, %v1227
        %1232 = vst [vmem:[%s292] sm:$0xff] %v1228
        %1233 = vst [vmem:[%s292 + $0x8] sm:$0xff] %v1229
        %1234 = vst [vmem:[%s292 + $0x10] sm:$0xff] %v1230
        %1235 = vst [vmem:[%s292 + $0x18] sm:$0xff] %v1231
        %s1236 = sand.u32 %s127, 1
        %s1237 = scalar_lea.sflag [#allocation4], %s1236
        %s1238 = sand.u32 %s127, 1
        %s1239 = smul.addr %s1238, 32
        %s1240 = scalar_lea.vmem [#allocation10], %s1239
        // Predicated region
        $region53: #{tpu_custom_call.1} parent=35 // pred_check
          %p1241 = pneg %p137
        $region54: #{tpu_custom_call.1} parent=35 // pred_check_branch
          %1243 = sbr.rel (%p1241) target = $region56
        $region55: #{tpu_custom_call.1} parent=35 // pred_region
          %s1244 = smul.u32 4, %s25
          %1246 = vsyncadd %s1237, 0
          %s1247 = smul.addr %s1244, 8
          %s1248 = scalar_lea.hbm %s4, %s1247
          %s1249 = sshll.u32 %s1240, 4
          %s1250 = int_to_ptr.vmem [resolvable:$true] %s1249
          %s1251 = sshll.u32 %s1248, 4
          %s1252 = int_to_ptr.hbm [resolvable:$true] %s1251
          %1257 = dma.vmem_to_hbm [thread:$0]  %s1250, 512, %s1252, %s1237, 128, 128, 8
        $region56: #{tpu_custom_call.1} parent=35 // pred_fallthru
          _
      $region36: #{tpu_custom_call.1} parent=5 // pred_fallthru
        _
      %p1258 = scmp.le.s32.totalorder 2, %s20
      // Predicated region
      $region57: #{tpu_custom_call.1} parent=5 // pred_check
        %p1259 = pneg %p1258
      $region58: #{tpu_custom_call.1} parent=5 // pred_check_branch
        %1261 = sbr.rel (%p1259) target = $region60
      $region59: #{tpu_custom_call.1} parent=5 // pred_region
        %s1262 = ssub.s32 %s20, 2
        // Predicated region
        $region61: #{tpu_custom_call.1} parent=59 // pred_check
          %p1263 = pneg %p143
        $region62: #{tpu_custom_call.1} parent=59 // pred_check_branch
          %1265 = sbr.rel (%p1263) target = $region64
        $region63: #{tpu_custom_call.1} parent=59 // pred_region
          %s1266 = sand.u32 %s128, 1
          %s1267 = scalar_lea.sflag [#allocation4], %s1266
          %s1268 = sand.u32 %s128, 1
          %s1269 = smul.addr %s1268, 32
          %s1270 = scalar_lea.vmem [#allocation10], %s1269
          %1272 = dma.done %s1267, 512
        $region64: #{tpu_custom_call.1} parent=59 // pred_fallthru
          _
      $region60: #{tpu_custom_call.1} parent=5 // pred_fallthru
        _
    $region6: #{tpu_custom_call.1} parent=1 // loop_footer
      %s24 = sadd.s32 1, %s20
    $region7: #{tpu_custom_call.1} parent=1 // loop_footer_branch
      %19 = sbr.rel target = $region3
    $region8: #{tpu_custom_call.1} parent=1 // loop_exit
      _
    %1273 = vsyncpa [#allocation3], 1
    %s1274 = scalar_lea.sflag [#allocation3], 1
    %1275 = vsyncpa %s1274, 1
    %1276 = vsyncpa [#allocation6], 1
    %s1277 = scalar_lea.sflag [#allocation6], 1
    %1278 = vsyncpa %s1277, 1
    %1279 = vsyncpa [#allocation9], 1
    %1280 = vsyncpa [#allocation4], 1
    %s1281 = scalar_lea.sflag [#allocation4], 1
    %1282 = vsyncpa %s1281, 1

</llo_original>
